<compile_context>
chip_gen: v7x
topology: tpu7x:2x2x1
jax: 0.10.0
libtpu: 0.0.40
codegen_flags: <defaults>
</compile_context>

<pallas_src>
import jax
import jax.numpy as jnp
from jax.experimental import pallas as pl
from jax.experimental.pallas import tpu as pltpu

_LANE = 128
_MAX_TM = 8192                              # lane cap per tile
_VMEM_FOOTPRINT_BUDGET = 24 * 1024 * 1024   # pipeline buffers + kernel temporaries
_VMEM_LIMIT_BYTES = 40 * 1024 * 1024        # explicit scoped-VMEM limit (safe on v5e/v6e/v7x)
_SMALL_FALLBACK_ELEMS = 64 * 1024           # below this, a fused XLA softmax wins


def _softmax_dim0_kernel(w_ref, out_ref):
    """Numerically stable softmax over axis 0 of the (N, TM) tile."""
    w = w_ref[...].astype(jnp.float32)             # (N, TM) in VMEM, f32 compute
    m = jnp.max(w, axis=0, keepdims=True)          # (1, TM)  column max (XLU)
    e = jnp.exp(w - m)                             # (N, TM)  EUP
    s = jnp.sum(e, axis=0, keepdims=True)          # (1, TM)  column sum (XLU)
    # Exact reciprocal on the tiny (1, TM) row (cost is negligible), then one
    # tile-wide multiply; keeps column sums within f32 epsilon of 1.0.
    r = 1.0 / s
    out_ref[...] = (e * r).astype(out_ref.dtype)   # (N, TM)


def _choose_tm(N, M, in_bytes, out_bytes):
    """Lane-dense M-tile that fits the VMEM footprint budget (or None)."""
    m_lanes = pl.cdiv(M, _LANE) * _LANE
    # Per-(row, lane) footprint: double-buffered input + output pipeline
    # buffers plus ~2 tile-sized f32 temporaries live inside the kernel body.
    per_elem = 2 * in_bytes + 2 * out_bytes + 2 * 4
    max_tm = (_VMEM_FOOTPRINT_BUDGET // (per_elem * N) // _LANE) * _LANE
    if max_tm < _LANE:
        return None                                # W too tall for this kernel
    tm = min(_MAX_TM, max_tm, m_lanes)
    # Prefer >= 2 M-tiles whenever M allows it so v7x's two TensorCores both
    # receive grid steps via the "parallel" dimension semantics.
    if m_lanes >= 2 * _LANE:
        half = max(_LANE, (pl.cdiv(m_lanes, 2) // _LANE) * _LANE)
        tm = min(tm, half)
    return tm


def multiple_policy_steady_state_softmax_markov_chain(W):
    """Forward pass: P = softmax(W, axis=0). W has shape (N, M)."""
    N, M = W.shape

    # TPU has no f64 vector support; bf16 inputs stay bf16 at the HBM boundary
    # (halves traffic), everything else is carried as f32.
    if W.dtype != jnp.bfloat16:
        W = W.astype(jnp.float32)
    out_dtype = W.dtype
    in_bytes = jnp.dtype(W.dtype).itemsize
    out_bytes = jnp.dtype(out_dtype).itemsize

    tm = _choose_tm(N, M, in_bytes, out_bytes)
    if N * M < _SMALL_FALLBACK_ELEMS or tm is None:
        # Tiny problem (launch overhead dominates) or W too tall for the
        # single-pass VMEM budget: let XLA handle it.
        return jax.nn.softmax(W, axis=0).astype(out_dtype)

    grid = (pl.cdiv(M, tm),)                       # partial final tile allowed
    out = pl.pallas_call(
        _softmax_dim0_kernel,
        out_shape=jax.ShapeDtypeStruct((N, M), out_dtype),
        grid=grid,
        # Full N extent per block (equals the array dim, so exempt from the
        # (8,128) rule); tm lanes per block (multiple of 128). The final tile
        # may be partial -> masked stores only on that one tile.
        in_specs=[pl.BlockSpec((N, tm), lambda i: (0, i))],
        out_specs=pl.BlockSpec((N, tm), lambda i: (0, i)),
        compiler_params=pltpu.CompilerParams(
            dimension_semantics=("parallel",),
            vmem_limit_bytes=_VMEM_LIMIT_BYTES,
        ),
        cost_estimate=pl.CostEstimate(
            flops=4 * N * M,                       # cmp, sub, add, mul per element
            transcendentals=N * M,                 # exp per element
            bytes_accessed=N * M * (in_bytes + out_bytes),
        ),
    )(W)
    return out


if __name__ == "__main__":
    key = jax.random.PRNGKey(0)
    k1, k2 = jax.random.split(key)

    # 1) Module-scale shape (N states x M policies): routed to the fused-XLA
    #    fallback, where launch overhead would dominate a kernel.
    N0, M0 = 16, 8
    W0 = jax.random.normal(k1, (N0, M0), dtype=jnp.float32)
    P0 = jax.block_until_ready(multiple_policy_steady_state_softmax_markov_chain(W0))
    P0_ref = jax.nn.softmax(W0, axis=0)
    assert P0.shape == (N0, M0)
    assert jnp.allclose(P0, P0_ref, atol=1e-6, rtol=1e-5)

    # 2) Larger shape that exercises the Pallas kernel, including a partial
    #    (masked) final M-tile since 300 is not a multiple of 128.
    N1, M1 = 256, 300
    W1 = jax.random.normal(k2, (N1, M1), dtype=jnp.float32)
    P1 = jax.block_until_ready(multiple_policy_steady_state_softmax_markov_chain(W1))
    P1_ref = jax.nn.softmax(W1, axis=0)
    assert P1.shape == (N1, M1)
    assert jnp.allclose(P1, P1_ref, atol=1e-6, rtol=1e-5)
    # Each column must sum to 1 (a probability distribution over states).
    assert jnp.allclose(jnp.sum(P1, axis=0), jnp.ones((M1,), jnp.float32), atol=1e-5)

    print("KERNEL_OK")
</pallas_src>

<mosaic_0001>
module attributes {stable_mosaic.version = 11 : i64} {
  func.func @_softmax_dim0_kernel(%arg0: i32, %arg1: memref<256x128xf32, #tpu.memory_space<vmem>>, %arg2: memref<256x128xf32, #tpu.memory_space<vmem>>) attributes {dimension_semantics = [#tpu.dimension_semantics<parallel>], iteration_bounds = array<i64: 3>, scalar_prefetch = 0 : i64, scratch_operands = 0 : i64, tpu.core_type = #tpu.core_type<tc>, window_params = [{transform_indices = @transform_0, window_bounds = array<i64: 256, 128>}, {transform_indices = @transform_1, window_bounds = array<i64: 256, 128>}]} {
    %c0 = arith.constant 0 : index
    %c0_0 = arith.constant 0 : index
    %0 = vector.load %arg1[%c0, %c0_0] : memref<256x128xf32, #tpu.memory_space<vmem>>, vector<256x128xf32>
    %cst = arith.constant dense<0xFF800000> : vector<128xf32>
    %1 = vector.multi_reduction <maximumf>, %0, %cst [0] : vector<256x128xf32> to vector<128xf32>
    %2 = vector.shape_cast %1 : vector<128xf32> to vector<1x128xf32>
    %3 = vector.broadcast %2 : vector<1x128xf32> to vector<256x128xf32>
    %4 = arith.subf %0, %3 : vector<256x128xf32>
    %5 = math.exp %4 : vector<256x128xf32>
    %cst_1 = arith.constant dense<0.000000e+00> : vector<128xf32>
    %6 = vector.multi_reduction <add>, %5, %cst_1 [0] : vector<256x128xf32> to vector<128xf32>
    %7 = vector.shape_cast %6 : vector<128xf32> to vector<1x128xf32>
    %cst_2 = arith.constant 1.000000e+00 : f32
    %8 = vector.broadcast %cst_2 : f32 to vector<1x128xf32>
    %9 = arith.divf %8, %7 : vector<1x128xf32>
    %10 = vector.broadcast %9 : vector<1x128xf32> to vector<256x128xf32>
    %11 = arith.mulf %5, %10 : vector<256x128xf32>
    %c0_3 = arith.constant 0 : index
    %c0_4 = arith.constant 0 : index
    %12 = vector.load %arg2[%c0_3, %c0_4] : memref<256x128xf32, #tpu.memory_space<vmem>>, vector<256x128xf32>
    tpu.vector_store %arg2[%c0_3, %c0_4], %11 {strides = array<i32>} : memref<256x128xf32, #tpu.memory_space<vmem>>, vector<256x128xf32>,
    return
  }
  func.func @transform_0(%arg0: i32) -> (i32, i32) {
    %c0_i32 = arith.constant 0 : i32
    %c0_i32_0 = arith.constant 0 : i32
    return %c0_i32, %arg0 : i32, i32
  }
  func.func @transform_1(%arg0: i32) -> (i32, i32) {
    %c0_i32 = arith.constant 0 : i32
    %c0_i32_0 = arith.constant 0 : i32
    return %c0_i32, %arg0 : i32, i32
  }
}

</mosaic_0001>

<llo_original>
// kernel: tpu_custom_call.1
$region0: #{tpu_custom_call.1}
  #allocation0 [shape = 'u32[]', space=smem, size = 0x4, offset = 0x4, fixed_abs, tag = 'smem constant byte address 0x4 - core index']
  #allocation1 [shape = 'u32[144,128]{1,0:T(1,128)}', space=vmem, size = 0x12000, scoped, tag = 'internal scratch']
  %s0 = inlined_call_operand.vmem [shape: f32[256,300], index: 0, kind: input, shape index: {}]
  %s1 = inlined_call_operand.vmem [shape: f32[256,300], index: 1, kind: output, shape index: {}]
  %s2 = sld [smem:[#allocation0]]
  $region109: #{tpu_custom_call.1} parent=0
    _
  %s4 = ssub.s32 1, %s2
  %s5 = scalar_select 0, %s4, %s2
  $region1: #{tpu_custom_call.1} parent=0
    #allocation2 [shape = 'u8[262144]{0}', space=vmem, size = 0x40000, scoped, tag = 'input window, operand 0']
    #allocation3 [shape = 'u8[262144]{0}', space=vmem, size = 0x40000, scoped, tag = 'output window, operand 0']
    loop: start=0, step=1, limit=5
    $region2: #{tpu_custom_call.1} parent=1 // loop_pre_header
      _
    $region3: #{tpu_custom_call.1} parent=1 // loop_header
      %s7 = sphi 0, %s11
      %p8 = scmp.ge.s32.totalorder %s7, 5
      %s17 = sphi 0, %s19
      %s20 = sphi 0, %s17
      %s21 = sphi 0, %s20
      %s37 = sphi 0, %s21
      %s43 = sphi 0, %s45
      %s46 = sphi 0, %s43
      %s47 = sphi 0, %s46
      %s63 = sphi 0, %s47
    $region4: #{tpu_custom_call.1} parent=1 // loop_header_branch
      %10 = sbr.rel (%p8) target = $region8
    $region5: #{tpu_custom_call.1} parent=1 // loop_body
      %s12 = ssub.s32 %s7, 1
      %s13 = ssub.s32 %s7, 2
      %s14 = sadd.s32 %s7, 1
      %s15 = ssub.s32 %s7, %s14
      %p16 = scmp.eq.s32.totalorder %s15, 0
      %s18 = sadd.s32 %s17, 1
      %s19 = scalar_select %p16, %s17, %s18
      %p22 = pneg %p16
      %p23 = scmp.eq.s32.totalorder %s7, 2
      %p24 = por %p22, %p23
      %p25 = scmp.ne.s32.totalorder %s17, %s20
      %p26 = scmp.eq.s32.totalorder %s7, 0
      %p27 = por %p25, %p26
      %p28 = scmp.ne.s32.totalorder %s17, %s20
      %p29 = scmp.eq.s32.totalorder %s12, 2
      %p30 = por %p28, %p29
      %p31 = scmp.ne.s32.totalorder %s20, %s21
      %p32 = scmp.eq.s32.totalorder %s12, 0
      %p33 = por %p31, %p32
      %p34 = scmp.ne.s32.totalorder %s20, %s21
      %p35 = scmp.eq.s32.totalorder %s13, 2
      %p36 = por %p34, %p35
      %p38 = scmp.ne.s32.totalorder %s21, %s37
      %p39 = scmp.eq.s32.totalorder %s13, 0
      %p40 = por %p38, %p39
      %s41 = ssub.s32 %s7, %s14
      %p42 = scmp.eq.s32.totalorder %s41, 0
      %s44 = sadd.s32 %s43, 1
      %s45 = scalar_select %p42, %s43, %s44
      %p48 = pneg %p42
      %p49 = scmp.eq.s32.totalorder %s7, 2
      %p50 = por %p48, %p49
      %p51 = scmp.ne.s32.totalorder %s43, %s46
      %p52 = scmp.eq.s32.totalorder %s7, 0
      %p53 = por %p51, %p52
      %p54 = scmp.ne.s32.totalorder %s43, %s46
      %p55 = scmp.eq.s32.totalorder %s12, 2
      %p56 = por %p54, %p55
      %p57 = scmp.ne.s32.totalorder %s46, %s47
      %p58 = scmp.eq.s32.totalorder %s12, 0
      %p59 = por %p57, %p58
      %p60 = scmp.ne.s32.totalorder %s46, %s47
      %p61 = scmp.eq.s32.totalorder %s13, 2
      %p62 = por %p60, %p61
      %p64 = scmp.ne.s32.totalorder %s47, %s63
      %p65 = scmp.eq.s32.totalorder %s13, 0
      %p66 = por %p64, %p65
      %p67 = scmp.le.s32.totalorder 1, %s7
      %p68 = scmp.lt.s32.totalorder %s7, 4
      %p69 = pnand %p67, %p68
      %p70 = pneg %p69
      // Predicated region
      $region9: #{tpu_custom_call.1} parent=5 // pred_check
        _
      $region10: #{tpu_custom_call.1} parent=5 // pred_check_branch
        %72 = sbr.rel (%p69) target = $region12
      $region11: #{tpu_custom_call.1} parent=5 // pred_region
        %s73 = ssub.s32 %s7, 1
      $region12: #{tpu_custom_call.1} parent=5 // pred_fallthru
        _
      %p74 = scmp.lt.s32.totalorder %s7, 3
      // Predicated region
      $region13: #{tpu_custom_call.1} parent=5 // pred_check
        %p75 = pneg %p74
      $region14: #{tpu_custom_call.1} parent=5 // pred_check_branch
        %77 = sbr.rel (%p75) target = $region16
      $region15: #{tpu_custom_call.1} parent=5 // pred_region
        // Predicated region
        $region17: #{tpu_custom_call.1} parent=15 // pred_check
          %p78 = pneg %p27
        $region18: #{tpu_custom_call.1} parent=15 // pred_check_branch
          %80 = sbr.rel (%p78) target = $region20
        $region19: #{tpu_custom_call.1} parent=15 // pred_region
          %s81 = sand.u32 %s17, 1
          %s82 = sand.u32 %s17, 1
          %s83 = smul.addr %s82, 256
          %s84 = scalar_lea.vmem [#allocation2], %s83
          %s85 = smul.addr %s7, 8
          %s86 = scalar_lea.vmem %s0, %s85
          // Predicated region
          $region21: #{tpu_custom_call.1} parent=19 // pred_check
            _
          $region22: #{tpu_custom_call.1} parent=19 // pred_check_branch
            %88 = sbr.rel (0) target = $region24
          $region23: #{tpu_custom_call.1} parent=19 // pred_region
            // Predicated region
            $region25: #{tpu_custom_call.1} parent=23 // pred_check
              _
            $region26: #{tpu_custom_call.1} parent=23 // pred_check_branch
              %90 = sbr.rel (0) target = $region28
            $region27: #{tpu_custom_call.1} parent=23 // pred_region
              // Predicated region
              $region40: #{tpu_custom_call.1} parent=27 // pred_check
                _
              $region41: #{tpu_custom_call.1} parent=27 // pred_check_branch
                %167 = sbr.rel (0) target = $region43
              $region42: #{tpu_custom_call.1} parent=27 // pred_region
                loop: start=0, step=1, limit=1
                $region44: #{tpu_custom_call.1} parent=42 // loop_pre_header
                  _
                $region45: #{tpu_custom_call.1} parent=42 // loop_header
                  %s169 = sphi 0, %s173
                  %p170 = scmp.ge.s32.totalorder %s169, 1
                  %s174 = sphi %s86, %s86
                  %s175 = sphi %s84, %s84
                $region46: #{tpu_custom_call.1} parent=42 // loop_header_branch
                  %172 = sbr.rel (%p170) target = $region50
                $region47: #{tpu_custom_call.1} parent=42 // loop_body
                  %v176 = vld [vmem:[%s174] sm:$0xff]
                  %177 = vst [vmem:[%s175] sm:$0xff] %v176
                  %v178 = vld [vmem:[%s174 + $0x18] sm:$0xff]
                  %179 = vst [vmem:[%s175 + $0x8] sm:$0xff] %v178
                  %v180 = vld [vmem:[%s174 + $0x30] sm:$0xff]
                  %181 = vst [vmem:[%s175 + $0x10] sm:$0xff] %v180
                  %v182 = vld [vmem:[%s174 + $0x48] sm:$0xff]
                  %183 = vst [vmem:[%s175 + $0x18] sm:$0xff] %v182
                  %v184 = vld [vmem:[%s174 + $0x60] sm:$0xff]
                  %185 = vst [vmem:[%s175 + $0x20] sm:$0xff] %v184
                  %v186 = vld [vmem:[%s174 + $0x78] sm:$0xff]
                  %187 = vst [vmem:[%s175 + $0x28] sm:$0xff] %v186
                  %v188 = vld [vmem:[%s174 + $0x90] sm:$0xff]
                  %189 = vst [vmem:[%s175 + $0x30] sm:$0xff] %v188
                  %v190 = vld [vmem:[%s174 + $0xa8] sm:$0xff]
                  %191 = vst [vmem:[%s175 + $0x38] sm:$0xff] %v190
                  %v192 = vld [vmem:[%s174 + $0xc0] sm:$0xff]
                  %193 = vst [vmem:[%s175 + $0x40] sm:$0xff] %v192
                  %v194 = vld [vmem:[%s174 + $0xd8] sm:$0xff]
                  %195 = vst [vmem:[%s175 + $0x48] sm:$0xff] %v194
                  %v196 = vld [vmem:[%s174 + $0xf0] sm:$0xff]
                  %197 = vst [vmem:[%s175 + $0x50] sm:$0xff] %v196
                  %v198 = vld [vmem:[%s174 + $0x108] sm:$0xff]
                  %199 = vst [vmem:[%s175 + $0x58] sm:$0xff] %v198
                  %v200 = vld [vmem:[%s174 + $0x120] sm:$0xff]
                  %201 = vst [vmem:[%s175 + $0x60] sm:$0xff] %v200
                  %v202 = vld [vmem:[%s174 + $0x138] sm:$0xff]
                  %203 = vst [vmem:[%s175 + $0x68] sm:$0xff] %v202
                  %v204 = vld [vmem:[%s174 + $0x150] sm:$0xff]
                  %205 = vst [vmem:[%s175 + $0x70] sm:$0xff] %v204
                  %v206 = vld [vmem:[%s174 + $0x168] sm:$0xff]
                  %207 = vst [vmem:[%s175 + $0x78] sm:$0xff] %v206
                  %v208 = vld [vmem:[%s174 + $0x180] sm:$0xff]
                  %209 = vst [vmem:[%s175 + $0x80] sm:$0xff] %v208
                  %v210 = vld [vmem:[%s174 + $0x198] sm:$0xff]
                  %211 = vst [vmem:[%s175 + $0x88] sm:$0xff] %v210
                  %v212 = vld [vmem:[%s174 + $0x1b0] sm:$0xff]
                  %213 = vst [vmem:[%s175 + $0x90] sm:$0xff] %v212
                  %v214 = vld [vmem:[%s174 + $0x1c8] sm:$0xff]
                  %215 = vst [vmem:[%s175 + $0x98] sm:$0xff] %v214
                  %v216 = vld [vmem:[%s174 + $0x1e0] sm:$0xff]
                  %217 = vst [vmem:[%s175 + $0xa0] sm:$0xff] %v216
                  %v218 = vld [vmem:[%s174 + $0x1f8] sm:$0xff]
                  %219 = vst [vmem:[%s175 + $0xa8] sm:$0xff] %v218
                  %v220 = vld [vmem:[%s174 + $0x210] sm:$0xff]
                  %221 = vst [vmem:[%s175 + $0xb0] sm:$0xff] %v220
                  %v222 = vld [vmem:[%s174 + $0x228] sm:$0xff]
                  %223 = vst [vmem:[%s175 + $0xb8] sm:$0xff] %v222
                  %v224 = vld [vmem:[%s174 + $0x240] sm:$0xff]
                  %225 = vst [vmem:[%s175 + $0xc0] sm:$0xff] %v224
                  %v226 = vld [vmem:[%s174 + $0x258] sm:$0xff]
                  %227 = vst [vmem:[%s175 + $0xc8] sm:$0xff] %v226
                  %v228 = vld [vmem:[%s174 + $0x270] sm:$0xff]
                  %229 = vst [vmem:[%s175 + $0xd0] sm:$0xff] %v228
                  %v230 = vld [vmem:[%s174 + $0x288] sm:$0xff]
                  %231 = vst [vmem:[%s175 + $0xd8] sm:$0xff] %v230
                  %v232 = vld [vmem:[%s174 + $0x2a0] sm:$0xff]
                  %233 = vst [vmem:[%s175 + $0xe0] sm:$0xff] %v232
                  %v234 = vld [vmem:[%s174 + $0x2b8] sm:$0xff]
                  %235 = vst [vmem:[%s175 + $0xe8] sm:$0xff] %v234
                  %v236 = vld [vmem:[%s174 + $0x2d0] sm:$0xff]
                  %237 = vst [vmem:[%s175 + $0xf0] sm:$0xff] %v236
                  %v238 = vld [vmem:[%s174 + $0x2e8] sm:$0xff]
                  %239 = vst [vmem:[%s175 + $0xf8] sm:$0xff] %v238
                $region48: #{tpu_custom_call.1} parent=42 // loop_footer
                  %s173 = sadd.s32 1, %s169
                $region49: #{tpu_custom_call.1} parent=42 // loop_footer_branch
                  %168 = sbr.rel target = $region45
                $region50: #{tpu_custom_call.1} parent=42 // loop_exit
                  _
              $region43: #{tpu_custom_call.1} parent=27 // pred_fallthru
                _
              // Predicated region
              $region51: #{tpu_custom_call.1} parent=27 // pred_check
                _
              $region52: #{tpu_custom_call.1} parent=27 // pred_check_branch
                %241 = sbr.rel target = $region54
              $region53: #{tpu_custom_call.1} parent=27 // pred_region
                _
              $region54: #{tpu_custom_call.1} parent=27 // pred_fallthru
                _
            $region28: #{tpu_custom_call.1} parent=23 // pred_fallthru
              _
            // Predicated region
            $region29: #{tpu_custom_call.1} parent=23 // pred_check
              _
            $region30: #{tpu_custom_call.1} parent=23 // pred_check_branch
              %92 = sbr.rel target = $region32
            $region31: #{tpu_custom_call.1} parent=23 // pred_region
              loop: start=0, step=1, limit=1
              $region33: #{tpu_custom_call.1} parent=31 // loop_pre_header
                _
              $region34: #{tpu_custom_call.1} parent=31 // loop_header
                %s95 = sphi 0, %s99
                %p96 = scmp.ge.s32.totalorder %s95, 1
                %s100 = sphi %s86, %s86
                %s101 = sphi %s84, %s84
              $region35: #{tpu_custom_call.1} parent=31 // loop_header_branch
                %98 = sbr.rel (%p96) target = $region39
              $region36: #{tpu_custom_call.1} parent=31 // loop_body
                %v102 = vld [vmem:[%s100] sm:$0xff]
                %103 = vst [vmem:[%s101] sm:$0xff] %v102
                %v104 = vld [vmem:[%s100 + $0x18] sm:$0xff]
                %105 = vst [vmem:[%s101 + $0x8] sm:$0xff] %v104
                %v106 = vld [vmem:[%s100 + $0x30] sm:$0xff]
                %107 = vst [vmem:[%s101 + $0x10] sm:$0xff] %v106
                %v108 = vld [vmem:[%s100 + $0x48] sm:$0xff]
                %109 = vst [vmem:[%s101 + $0x18] sm:$0xff] %v108
                %v110 = vld [vmem:[%s100 + $0x60] sm:$0xff]
                %111 = vst [vmem:[%s101 + $0x20] sm:$0xff] %v110
                %v112 = vld [vmem:[%s100 + $0x78] sm:$0xff]
                %113 = vst [vmem:[%s101 + $0x28] sm:$0xff] %v112
                %v114 = vld [vmem:[%s100 + $0x90] sm:$0xff]
                %115 = vst [vmem:[%s101 + $0x30] sm:$0xff] %v114
                %v116 = vld [vmem:[%s100 + $0xa8] sm:$0xff]
                %117 = vst [vmem:[%s101 + $0x38] sm:$0xff] %v116
                %v118 = vld [vmem:[%s100 + $0xc0] sm:$0xff]
                %119 = vst [vmem:[%s101 + $0x40] sm:$0xff] %v118
                %v120 = vld [vmem:[%s100 + $0xd8] sm:$0xff]
                %121 = vst [vmem:[%s101 + $0x48] sm:$0xff] %v120
                %v122 = vld [vmem:[%s100 + $0xf0] sm:$0xff]
                %123 = vst [vmem:[%s101 + $0x50] sm:$0xff] %v122
                %v124 = vld [vmem:[%s100 + $0x108] sm:$0xff]
                %125 = vst [vmem:[%s101 + $0x58] sm:$0xff] %v124
                %v126 = vld [vmem:[%s100 + $0x120] sm:$0xff]
                %127 = vst [vmem:[%s101 + $0x60] sm:$0xff] %v126
                %v128 = vld [vmem:[%s100 + $0x138] sm:$0xff]
                %129 = vst [vmem:[%s101 + $0x68] sm:$0xff] %v128
                %v130 = vld [vmem:[%s100 + $0x150] sm:$0xff]
                %131 = vst [vmem:[%s101 + $0x70] sm:$0xff] %v130
                %v132 = vld [vmem:[%s100 + $0x168] sm:$0xff]
                %133 = vst [vmem:[%s101 + $0x78] sm:$0xff] %v132
                %v134 = vld [vmem:[%s100 + $0x180] sm:$0xff]
                %135 = vst [vmem:[%s101 + $0x80] sm:$0xff] %v134
                %v136 = vld [vmem:[%s100 + $0x198] sm:$0xff]
                %137 = vst [vmem:[%s101 + $0x88] sm:$0xff] %v136
                %v138 = vld [vmem:[%s100 + $0x1b0] sm:$0xff]
                %139 = vst [vmem:[%s101 + $0x90] sm:$0xff] %v138
                %v140 = vld [vmem:[%s100 + $0x1c8] sm:$0xff]
                %141 = vst [vmem:[%s101 + $0x98] sm:$0xff] %v140
                %v142 = vld [vmem:[%s100 + $0x1e0] sm:$0xff]
                %143 = vst [vmem:[%s101 + $0xa0] sm:$0xff] %v142
                %v144 = vld [vmem:[%s100 + $0x1f8] sm:$0xff]
                %145 = vst [vmem:[%s101 + $0xa8] sm:$0xff] %v144
                %v146 = vld [vmem:[%s100 + $0x210] sm:$0xff]
                %147 = vst [vmem:[%s101 + $0xb0] sm:$0xff] %v146
                %v148 = vld [vmem:[%s100 + $0x228] sm:$0xff]
                %149 = vst [vmem:[%s101 + $0xb8] sm:$0xff] %v148
                %v150 = vld [vmem:[%s100 + $0x240] sm:$0xff]
                %151 = vst [vmem:[%s101 + $0xc0] sm:$0xff] %v150
                %v152 = vld [vmem:[%s100 + $0x258] sm:$0xff]
                %153 = vst [vmem:[%s101 + $0xc8] sm:$0xff] %v152
                %v154 = vld [vmem:[%s100 + $0x270] sm:$0xff]
                %155 = vst [vmem:[%s101 + $0xd0] sm:$0xff] %v154
                %v156 = vld [vmem:[%s100 + $0x288] sm:$0xff]
                %157 = vst [vmem:[%s101 + $0xd8] sm:$0xff] %v156
                %v158 = vld [vmem:[%s100 + $0x2a0] sm:$0xff]
                %159 = vst [vmem:[%s101 + $0xe0] sm:$0xff] %v158
                %v160 = vld [vmem:[%s100 + $0x2b8] sm:$0xff]
                %161 = vst [vmem:[%s101 + $0xe8] sm:$0xff] %v160
                %v162 = vld [vmem:[%s100 + $0x2d0] sm:$0xff]
                %163 = vst [vmem:[%s101 + $0xf0] sm:$0xff] %v162
                %v164 = vld [vmem:[%s100 + $0x2e8] sm:$0xff]
                %165 = vst [vmem:[%s101 + $0xf8] sm:$0xff] %v164
              $region37: #{tpu_custom_call.1} parent=31 // loop_footer
                %s99 = sadd.s32 1, %s95
              $region38: #{tpu_custom_call.1} parent=31 // loop_footer_branch
                %94 = sbr.rel target = $region34
              $region39: #{tpu_custom_call.1} parent=31 // loop_exit
                _
            $region32: #{tpu_custom_call.1} parent=23 // pred_fallthru
              _
          $region24: #{tpu_custom_call.1} parent=19 // pred_fallthru
            _
          %242 = vnop
        $region20: #{tpu_custom_call.1} parent=15 // pred_fallthru
          _
      $region16: #{tpu_custom_call.1} parent=5 // pred_fallthru
        _
      %p243 = scmp.le.s32.totalorder 1, %s7
      %p244 = scmp.lt.s32.totalorder %s7, 4
      %p245 = pnand %p243, %p244
      %p246 = pneg %p245
      // Predicated region
      $region55: #{tpu_custom_call.1} parent=5 // pred_check
        _
      $region56: #{tpu_custom_call.1} parent=5 // pred_check_branch
        %248 = sbr.rel (%p245) target = $region58
      $region57: #{tpu_custom_call.1} parent=5 // pred_region
        %s249 = ssub.s32 %s7, 1
        %s250 = sand.u32 %s20, 1
        %s251 = sand.u32 %s20, 1
        %s252 = smul.addr %s251, 256
        %s253 = scalar_lea.vmem [#allocation2], %s252
        // Predicated region
        $region59: #{tpu_custom_call.1} parent=57 // pred_check
          %p254 = pneg %p33
        $region60: #{tpu_custom_call.1} parent=57 // pred_check_branch
          %256 = sbr.rel (%p254) target = $region62
        $region61: #{tpu_custom_call.1} parent=57 // pred_region
          _
        $region62: #{tpu_custom_call.1} parent=57 // pred_fallthru
          _
        %s257 = sand.u32 %s20, 1
        %s258 = sand.u32 %s20, 1
        %s259 = smul.addr %s258, 256
        %s260 = scalar_lea.vmem [#allocation2], %s259
        %p261 = pneg %p33
        %p262 = pneg %p30
        %p263 = pneg %p59
        %p264 = pneg %p56
        %s265 = sand.u32 %s46, 1
        %s266 = sand.u32 %s46, 1
        %s267 = smul.addr %s266, 256
        %s268 = scalar_lea.vmem [#allocation3], %s267
        %v269 = vld [vmem:[%s253] sm:$0xff]
        %v270 = vld [vmem:[%s253 + $0x8] sm:$0xff]
        %v271 = vld [vmem:[%s253 + $0x10] sm:$0xff]
        %v272 = vld [vmem:[%s253 + $0x18] sm:$0xff]
        %v273 = vld [vmem:[%s253 + $0x20] sm:$0xff]
        %v274 = vld [vmem:[%s253 + $0x28] sm:$0xff]
        %v275 = vld [vmem:[%s253 + $0x30] sm:$0xff]
        %v276 = vld [vmem:[%s253 + $0x38] sm:$0xff]
        %v277 = vld [vmem:[%s253 + $0x40] sm:$0xff]
        %v278 = vld [vmem:[%s253 + $0x48] sm:$0xff]
        %v279 = vld [vmem:[%s253 + $0x50] sm:$0xff]
        %v280 = vld [vmem:[%s253 + $0x58] sm:$0xff]
        %v281 = vld [vmem:[%s253 + $0x60] sm:$0xff]
        %v282 = vld [vmem:[%s253 + $0x68] sm:$0xff]
        %v283 = vld [vmem:[%s253 + $0x70] sm:$0xff]
        %v284 = vld [vmem:[%s253 + $0x78] sm:$0xff]
        %v285 = vld [vmem:[%s253 + $0x80] sm:$0xff]
        %v286 = vld [vmem:[%s253 + $0x88] sm:$0xff]
        %v287 = vld [vmem:[%s253 + $0x90] sm:$0xff]
        %v288 = vld [vmem:[%s253 + $0x98] sm:$0xff]
        %v289 = vld [vmem:[%s253 + $0xa0] sm:$0xff]
        %v290 = vld [vmem:[%s253 + $0xa8] sm:$0xff]
        %v291 = vld [vmem:[%s253 + $0xb0] sm:$0xff]
        %v292 = vld [vmem:[%s253 + $0xb8] sm:$0xff]
        %v293 = vld [vmem:[%s253 + $0xc0] sm:$0xff]
        %v294 = vld [vmem:[%s253 + $0xc8] sm:$0xff]
        %v295 = vld [vmem:[%s253 + $0xd0] sm:$0xff]
        %v296 = vld [vmem:[%s253 + $0xd8] sm:$0xff]
        %v297 = vld [vmem:[%s253 + $0xe0] sm:$0xff]
        %v298 = vld [vmem:[%s253 + $0xe8] sm:$0xff]
        %v299 = vld [vmem:[%s253 + $0xf0] sm:$0xff]
        %v300 = vld [vmem:[%s253 + $0xf8] sm:$0xff]
        %v301 = vmax.f32 %v269, %v273
        %v302 = vmax.f32 %v270, %v274
        %v303 = vmax.f32 %v271, %v275
        %v304 = vmax.f32 %v272, %v276
        %v305 = vmax.f32 %v301, %v277
        %v306 = vmax.f32 %v302, %v278
        %v307 = vmax.f32 %v303, %v279
        %v308 = vmax.f32 %v304, %v280
        %v309 = vmax.f32 %v305, %v281
        %v310 = vmax.f32 %v306, %v282
        %v311 = vmax.f32 %v307, %v283
        %v312 = vmax.f32 %v308, %v284
        %v313 = vmax.f32 %v309, %v285
        %v314 = vmax.f32 %v310, %v286
        %v315 = vmax.f32 %v311, %v287
        %v316 = vmax.f32 %v312, %v288
        %v317 = vmax.f32 %v313, %v289
        %v318 = vmax.f32 %v314, %v290
        %v319 = vmax.f32 %v315, %v291
        %v320 = vmax.f32 %v316, %v292
        %v321 = vmax.f32 %v317, %v293
        %v322 = vmax.f32 %v318, %v294
        %v323 = vmax.f32 %v319, %v295
        %v324 = vmax.f32 %v320, %v296
        %v325 = vmax.f32 %v321, %v297
        %v326 = vmax.f32 %v322, %v298
        %v327 = vmax.f32 %v323, %v299
        %v328 = vmax.f32 %v324, %v300
        %v329 = vmax.f32 %v325, %v326
        %v330 = vmax.f32 %v327, %v328
        %v331 = vmax.f32 %v329, %v330
        %v332 = vrot.slane %v331, 4
        %v333 = vmax.f32 %v331, %v332
        %v334 = vrot.slane %v333, 2
        %v335 = vmax.f32 %v333, %v334
        %v336 = vrot.slane %v335, 1
        %v337 = vmax.f32 %v335, %v336
        %v338 = vsub.f32 %v269, %v337
        %v339 = vsub.f32 %v270, %v337
        %v340 = vsub.f32 %v271, %v337
        %v341 = vsub.f32 %v272, %v337
        %v342 = vsub.f32 %v273, %v337
        %v343 = vsub.f32 %v274, %v337
        %v344 = vsub.f32 %v275, %v337
        %v345 = vsub.f32 %v276, %v337
        %v346 = vsub.f32 %v277, %v337
        %v347 = vsub.f32 %v278, %v337
        %v348 = vsub.f32 %v279, %v337
        %v349 = vsub.f32 %v280, %v337
        %v350 = vsub.f32 %v281, %v337
        %v351 = vsub.f32 %v282, %v337
        %v352 = vsub.f32 %v283, %v337
        %v353 = vsub.f32 %v284, %v337
        %v354 = vsub.f32 %v285, %v337
        %v355 = vsub.f32 %v286, %v337
        %v356 = vsub.f32 %v287, %v337
        %v357 = vsub.f32 %v288, %v337
        %v358 = vsub.f32 %v289, %v337
        %v359 = vsub.f32 %v290, %v337
        %v360 = vsub.f32 %v291, %v337
        %v361 = vsub.f32 %v292, %v337
        %v362 = vsub.f32 %v293, %v337
        %v363 = vsub.f32 %v294, %v337
        %v364 = vsub.f32 %v295, %v337
        %v365 = vsub.f32 %v296, %v337
        %v366 = vsub.f32 %v297, %v337
        %v367 = vsub.f32 %v298, %v337
        %v368 = vsub.f32 %v299, %v337
        %v369 = vsub.f32 %v300, %v337
        %v370 = vmul.f32 %v338, 1.442695
        %v371 = vpow.pop %v370
        %v372 = vmul.f32 %v339, 1.442695
        %v373 = vpow.pop %v372
        %v374 = vmul.f32 %v340, 1.442695
        %v375 = vpow.pop %v374
        %v376 = vmul.f32 %v341, 1.442695
        %v377 = vpow.pop %v376
        %v378 = vmul.f32 %v342, 1.442695
        %v379 = vpow.pop %v378
        %v380 = vmul.f32 %v343, 1.442695
        %v381 = vpow.pop %v380
        %v382 = vmul.f32 %v344, 1.442695
        %v383 = vpow.pop %v382
        %v384 = vmul.f32 %v345, 1.442695
        %v385 = vpow.pop %v384
        %v386 = vmul.f32 %v346, 1.442695
        %v387 = vpow.pop %v386
        %v388 = vmul.f32 %v347, 1.442695
        %v389 = vpow.pop %v388
        %v390 = vmul.f32 %v348, 1.442695
        %v391 = vpow.pop %v390
        %v392 = vmul.f32 %v349, 1.442695
        %v393 = vpow.pop %v392
        %v394 = vmul.f32 %v350, 1.442695
        %v395 = vpow.pop %v394
        %v396 = vmul.f32 %v351, 1.442695
        %v397 = vpow.pop %v396
        %v398 = vmul.f32 %v352, 1.442695
        %v399 = vpow.pop %v398
        %v400 = vmul.f32 %v353, 1.442695
        %v401 = vpow.pop %v400
        %v402 = vmul.f32 %v354, 1.442695
        %v403 = vpow.pop %v402
        %v404 = vmul.f32 %v355, 1.442695
        %v405 = vpow.pop %v404
        %v406 = vmul.f32 %v356, 1.442695
        %v407 = vpow.pop %v406
        %v408 = vmul.f32 %v357, 1.442695
        %v409 = vpow.pop %v408
        %v410 = vmul.f32 %v358, 1.442695
        %v411 = vpow.pop %v410
        %v412 = vmul.f32 %v359, 1.442695
        %v413 = vpow.pop %v412
        %v414 = vmul.f32 %v360, 1.442695
        %v415 = vpow.pop %v414
        %v416 = vmul.f32 %v361, 1.442695
        %v417 = vpow.pop %v416
        %v418 = vmul.f32 %v362, 1.442695
        %v419 = vpow.pop %v418
        %v420 = vmul.f32 %v363, 1.442695
        %v421 = vpow.pop %v420
        %v422 = vmul.f32 %v364, 1.442695
        %v423 = vpow.pop %v422
        %v424 = vmul.f32 %v365, 1.442695
        %v425 = vpow.pop %v424
        %v426 = vmul.f32 %v366, 1.442695
        %v427 = vpow.pop %v426
        %v428 = vmul.f32 %v367, 1.442695
        %v429 = vpow.pop %v428
        %v430 = vmul.f32 %v368, 1.442695
        %v431 = vpow.pop %v430
        %v432 = vmul.f32 %v369, 1.442695
        %v433 = vpow.pop %v432
        %v434 = vadd.f32 %v371, %v373
        %v435 = vadd.f32 %v434, %v375
        %v436 = vadd.f32 %v435, %v377
        %v437 = vadd.f32 %v436, %v379
        %v438 = vadd.f32 %v437, %v381
        %v439 = vadd.f32 %v438, %v383
        %v440 = vadd.f32 %v439, %v385
        %v441 = vadd.f32 %v440, %v387
        %v442 = vadd.f32 %v441, %v389
        %v443 = vadd.f32 %v442, %v391
        %v444 = vadd.f32 %v443, %v393
        %v445 = vadd.f32 %v444, %v395
        %v446 = vadd.f32 %v445, %v397
        %v447 = vadd.f32 %v446, %v399
        %v448 = vadd.f32 %v447, %v401
        %v449 = vadd.f32 %v448, %v403
        %v450 = vadd.f32 %v449, %v405
        %v451 = vadd.f32 %v450, %v407
        %v452 = vadd.f32 %v451, %v409
        %v453 = vadd.f32 %v452, %v411
        %v454 = vadd.f32 %v453, %v413
        %v455 = vadd.f32 %v454, %v415
        %v456 = vadd.f32 %v455, %v417
        %v457 = vadd.f32 %v456, %v419
        %v458 = vadd.f32 %v457, %v421
        %v459 = vadd.f32 %v458, %v423
        %v460 = vadd.f32 %v459, %v425
        %v461 = vadd.f32 %v460, %v427
        %v462 = vadd.f32 %v461, %v429
        %v463 = vadd.f32 %v462, %v431
        %v464 = vadd.f32 %v463, %v433
        %v465 = vrot.slane %v464, 4
        %v466 = vadd.f32 %v464, %v465
        %v467 = vrot.slane %v466, 2
        %v468 = vadd.f32 %v466, %v467
        %v469 = vrot.slane %v468, 1
        %v470 = vadd.f32 %v468, %v469
        %v471 = vrcp.pop %v470
        %v472 = vmul.f32 1.0, %v471
        %v473 = vmul.f32 %v371, %v472
        %v474 = vmul.f32 %v373, %v472
        %v475 = vmul.f32 %v375, %v472
        %v476 = vmul.f32 %v377, %v472
        %v477 = vmul.f32 %v379, %v472
        %v478 = vmul.f32 %v381, %v472
        %v479 = vmul.f32 %v383, %v472
        %v480 = vmul.f32 %v385, %v472
        %v481 = vmul.f32 %v387, %v472
        %v482 = vmul.f32 %v389, %v472
        %v483 = vmul.f32 %v391, %v472
        %v484 = vmul.f32 %v393, %v472
        %v485 = vmul.f32 %v395, %v472
        %v486 = vmul.f32 %v397, %v472
        %v487 = vmul.f32 %v399, %v472
        %v488 = vmul.f32 %v401, %v472
        %v489 = vmul.f32 %v403, %v472
        %v490 = vmul.f32 %v405, %v472
        %v491 = vmul.f32 %v407, %v472
        %v492 = vmul.f32 %v409, %v472
        %v493 = vmul.f32 %v411, %v472
        %v494 = vmul.f32 %v413, %v472
        %v495 = vmul.f32 %v415, %v472
        %v496 = vmul.f32 %v417, %v472
        %v497 = vmul.f32 %v419, %v472
        %v498 = vmul.f32 %v421, %v472
        %v499 = vmul.f32 %v423, %v472
        %v500 = vmul.f32 %v425, %v472
        %v501 = vmul.f32 %v427, %v472
        %v502 = vmul.f32 %v429, %v472
        %v503 = vmul.f32 %v431, %v472
        %v504 = vmul.f32 %v433, %v472
        %505 = vst [vmem:[%s268] sm:$0xff] %v473
        %506 = vst [vmem:[%s268 + $0x8] sm:$0xff] %v474
        %507 = vst [vmem:[%s268 + $0x10] sm:$0xff] %v475
        %508 = vst [vmem:[%s268 + $0x18] sm:$0xff] %v476
        %509 = vst [vmem:[%s268 + $0x20] sm:$0xff] %v477
        %510 = vst [vmem:[%s268 + $0x28] sm:$0xff] %v478
        %511 = vst [vmem:[%s268 + $0x30] sm:$0xff] %v479
        %512 = vst [vmem:[%s268 + $0x38] sm:$0xff] %v480
        %513 = vst [vmem:[%s268 + $0x40] sm:$0xff] %v481
        %514 = vst [vmem:[%s268 + $0x48] sm:$0xff] %v482
        %515 = vst [vmem:[%s268 + $0x50] sm:$0xff] %v483
        %516 = vst [vmem:[%s268 + $0x58] sm:$0xff] %v484
        %517 = vst [vmem:[%s268 + $0x60] sm:$0xff] %v485
        %518 = vst [vmem:[%s268 + $0x68] sm:$0xff] %v486
        %519 = vst [vmem:[%s268 + $0x70] sm:$0xff] %v487
        %520 = vst [vmem:[%s268 + $0x78] sm:$0xff] %v488
        %521 = vst [vmem:[%s268 + $0x80] sm:$0xff] %v489
        %522 = vst [vmem:[%s268 + $0x88] sm:$0xff] %v490
        %523 = vst [vmem:[%s268 + $0x90] sm:$0xff] %v491
        %524 = vst [vmem:[%s268 + $0x98] sm:$0xff] %v492
        %525 = vst [vmem:[%s268 + $0xa0] sm:$0xff] %v493
        %526 = vst [vmem:[%s268 + $0xa8] sm:$0xff] %v494
        %527 = vst [vmem:[%s268 + $0xb0] sm:$0xff] %v495
        %528 = vst [vmem:[%s268 + $0xb8] sm:$0xff] %v496
        %529 = vst [vmem:[%s268 + $0xc0] sm:$0xff] %v497
        %530 = vst [vmem:[%s268 + $0xc8] sm:$0xff] %v498
        %531 = vst [vmem:[%s268 + $0xd0] sm:$0xff] %v499
        %532 = vst [vmem:[%s268 + $0xd8] sm:$0xff] %v500
        %533 = vst [vmem:[%s268 + $0xe0] sm:$0xff] %v501
        %534 = vst [vmem:[%s268 + $0xe8] sm:$0xff] %v502
        %535 = vst [vmem:[%s268 + $0xf0] sm:$0xff] %v503
        %536 = vst [vmem:[%s268 + $0xf8] sm:$0xff] %v504
        %s537 = sand.u32 %s46, 1
        %s538 = sand.u32 %s46, 1
        %s539 = smul.addr %s538, 256
        %s540 = scalar_lea.vmem [#allocation3], %s539
        // Predicated region
        $region63: #{tpu_custom_call.1} parent=57 // pred_check
          %p541 = pneg %p56
        $region64: #{tpu_custom_call.1} parent=57 // pred_check_branch
          %543 = sbr.rel (%p541) target = $region66
        $region65: #{tpu_custom_call.1} parent=57 // pred_region
          %s544 = smul.addr %s12, 8
          %s545 = scalar_lea.vmem %s1, %s544
          // Predicated region
          $region67: #{tpu_custom_call.1} parent=65 // pred_check
            _
          $region68: #{tpu_custom_call.1} parent=65 // pred_check_branch
            %547 = sbr.rel (0) target = $region70
          $region69: #{tpu_custom_call.1} parent=65 // pred_region
            // Predicated region
            $region71: #{tpu_custom_call.1} parent=69 // pred_check
              _
            $region72: #{tpu_custom_call.1} parent=69 // pred_check_branch
              %549 = sbr.rel (0) target = $region74
            $region73: #{tpu_custom_call.1} parent=69 // pred_region
              // Predicated region
              $region86: #{tpu_custom_call.1} parent=73 // pred_check
                _
              $region87: #{tpu_custom_call.1} parent=73 // pred_check_branch
                %626 = sbr.rel (0) target = $region89
              $region88: #{tpu_custom_call.1} parent=73 // pred_region
                loop: start=0, step=1, limit=1
                $region90: #{tpu_custom_call.1} parent=88 // loop_pre_header
                  _
                $region91: #{tpu_custom_call.1} parent=88 // loop_header
                  %s628 = sphi 0, %s632
                  %p629 = scmp.ge.s32.totalorder %s628, 1
                  %s633 = sphi %s540, %s540
                  %s634 = sphi %s545, %s545
                $region92: #{tpu_custom_call.1} parent=88 // loop_header_branch
                  %631 = sbr.rel (%p629) target = $region96
                $region93: #{tpu_custom_call.1} parent=88 // loop_body
                  %v635 = vld [vmem:[%s633] sm:$0xff]
                  %636 = vst [vmem:[%s634] sm:$0xff] %v635
                  %v637 = vld [vmem:[%s633 + $0x8] sm:$0xff]
                  %638 = vst [vmem:[%s634 + $0x18] sm:$0xff] %v637
                  %v639 = vld [vmem:[%s633 + $0x10] sm:$0xff]
                  %640 = vst [vmem:[%s634 + $0x30] sm:$0xff] %v639
                  %v641 = vld [vmem:[%s633 + $0x18] sm:$0xff]
                  %642 = vst [vmem:[%s634 + $0x48] sm:$0xff] %v641
                  %v643 = vld [vmem:[%s633 + $0x20] sm:$0xff]
                  %644 = vst [vmem:[%s634 + $0x60] sm:$0xff] %v643
                  %v645 = vld [vmem:[%s633 + $0x28] sm:$0xff]
                  %646 = vst [vmem:[%s634 + $0x78] sm:$0xff] %v645
                  %v647 = vld [vmem:[%s633 + $0x30] sm:$0xff]
                  %648 = vst [vmem:[%s634 + $0x90] sm:$0xff] %v647
                  %v649 = vld [vmem:[%s633 + $0x38] sm:$0xff]
                  %650 = vst [vmem:[%s634 + $0xa8] sm:$0xff] %v649
                  %v651 = vld [vmem:[%s633 + $0x40] sm:$0xff]
                  %652 = vst [vmem:[%s634 + $0xc0] sm:$0xff] %v651
                  %v653 = vld [vmem:[%s633 + $0x48] sm:$0xff]
                  %654 = vst [vmem:[%s634 + $0xd8] sm:$0xff] %v653
                  %v655 = vld [vmem:[%s633 + $0x50] sm:$0xff]
                  %656 = vst [vmem:[%s634 + $0xf0] sm:$0xff] %v655
                  %v657 = vld [vmem:[%s633 + $0x58] sm:$0xff]
                  %658 = vst [vmem:[%s634 + $0x108] sm:$0xff] %v657
                  %v659 = vld [vmem:[%s633 + $0x60] sm:$0xff]
                  %660 = vst [vmem:[%s634 + $0x120] sm:$0xff] %v659
                  %v661 = vld [vmem:[%s633 + $0x68] sm:$0xff]
                  %662 = vst [vmem:[%s634 + $0x138] sm:$0xff] %v661
                  %v663 = vld [vmem:[%s633 + $0x70] sm:$0xff]
                  %664 = vst [vmem:[%s634 + $0x150] sm:$0xff] %v663
                  %v665 = vld [vmem:[%s633 + $0x78] sm:$0xff]
                  %666 = vst [vmem:[%s634 + $0x168] sm:$0xff] %v665
                  %v667 = vld [vmem:[%s633 + $0x80] sm:$0xff]
                  %668 = vst [vmem:[%s634 + $0x180] sm:$0xff] %v667
                  %v669 = vld [vmem:[%s633 + $0x88] sm:$0xff]
                  %670 = vst [vmem:[%s634 + $0x198] sm:$0xff] %v669
                  %v671 = vld [vmem:[%s633 + $0x90] sm:$0xff]
                  %672 = vst [vmem:[%s634 + $0x1b0] sm:$0xff] %v671
                  %v673 = vld [vmem:[%s633 + $0x98] sm:$0xff]
                  %674 = vst [vmem:[%s634 + $0x1c8] sm:$0xff] %v673
                  %v675 = vld [vmem:[%s633 + $0xa0] sm:$0xff]
                  %676 = vst [vmem:[%s634 + $0x1e0] sm:$0xff] %v675
                  %v677 = vld [vmem:[%s633 + $0xa8] sm:$0xff]
                  %678 = vst [vmem:[%s634 + $0x1f8] sm:$0xff] %v677
                  %v679 = vld [vmem:[%s633 + $0xb0] sm:$0xff]
                  %680 = vst [vmem:[%s634 + $0x210] sm:$0xff] %v679
                  %v681 = vld [vmem:[%s633 + $0xb8] sm:$0xff]
                  %682 = vst [vmem:[%s634 + $0x228] sm:$0xff] %v681
                  %v683 = vld [vmem:[%s633 + $0xc0] sm:$0xff]
                  %684 = vst [vmem:[%s634 + $0x240] sm:$0xff] %v683
                  %v685 = vld [vmem:[%s633 + $0xc8] sm:$0xff]
                  %686 = vst [vmem:[%s634 + $0x258] sm:$0xff] %v685
                  %v687 = vld [vmem:[%s633 + $0xd0] sm:$0xff]
                  %688 = vst [vmem:[%s634 + $0x270] sm:$0xff] %v687
                  %v689 = vld [vmem:[%s633 + $0xd8] sm:$0xff]
                  %690 = vst [vmem:[%s634 + $0x288] sm:$0xff] %v689
                  %v691 = vld [vmem:[%s633 + $0xe0] sm:$0xff]
                  %692 = vst [vmem:[%s634 + $0x2a0] sm:$0xff] %v691
                  %v693 = vld [vmem:[%s633 + $0xe8] sm:$0xff]
                  %694 = vst [vmem:[%s634 + $0x2b8] sm:$0xff] %v693
                  %v695 = vld [vmem:[%s633 + $0xf0] sm:$0xff]
                  %696 = vst [vmem:[%s634 + $0x2d0] sm:$0xff] %v695
                  %v697 = vld [vmem:[%s633 + $0xf8] sm:$0xff]
                  %698 = vst [vmem:[%s634 + $0x2e8] sm:$0xff] %v697
                $region94: #{tpu_custom_call.1} parent=88 // loop_footer
                  %s632 = sadd.s32 1, %s628
                $region95: #{tpu_custom_call.1} parent=88 // loop_footer_branch
                  %627 = sbr.rel target = $region91
                $region96: #{tpu_custom_call.1} parent=88 // loop_exit
                  _
              $region89: #{tpu_custom_call.1} parent=73 // pred_fallthru
                _
              // Predicated region
              $region97: #{tpu_custom_call.1} parent=73 // pred_check
                _
              $region98: #{tpu_custom_call.1} parent=73 // pred_check_branch
                %700 = sbr.rel target = $region100
              $region99: #{tpu_custom_call.1} parent=73 // pred_region
                _
              $region100: #{tpu_custom_call.1} parent=73 // pred_fallthru
                _
            $region74: #{tpu_custom_call.1} parent=69 // pred_fallthru
              _
            // Predicated region
            $region75: #{tpu_custom_call.1} parent=69 // pred_check
              _
            $region76: #{tpu_custom_call.1} parent=69 // pred_check_branch
              %551 = sbr.rel target = $region78
            $region77: #{tpu_custom_call.1} parent=69 // pred_region
              loop: start=0, step=1, limit=1
              $region79: #{tpu_custom_call.1} parent=77 // loop_pre_header
                _
              $region80: #{tpu_custom_call.1} parent=77 // loop_header
                %s554 = sphi 0, %s558
                %p555 = scmp.ge.s32.totalorder %s554, 1
                %s559 = sphi %s540, %s540
                %s560 = sphi %s545, %s545
              $region81: #{tpu_custom_call.1} parent=77 // loop_header_branch
                %557 = sbr.rel (%p555) target = $region85
              $region82: #{tpu_custom_call.1} parent=77 // loop_body
                %v561 = vld [vmem:[%s559] sm:$0xff]
                %562 = vst [vmem:[%s560] sm:$0xff] %v561
                %v563 = vld [vmem:[%s559 + $0x8] sm:$0xff]
                %564 = vst [vmem:[%s560 + $0x18] sm:$0xff] %v563
                %v565 = vld [vmem:[%s559 + $0x10] sm:$0xff]
                %566 = vst [vmem:[%s560 + $0x30] sm:$0xff] %v565
                %v567 = vld [vmem:[%s559 + $0x18] sm:$0xff]
                %568 = vst [vmem:[%s560 + $0x48] sm:$0xff] %v567
                %v569 = vld [vmem:[%s559 + $0x20] sm:$0xff]
                %570 = vst [vmem:[%s560 + $0x60] sm:$0xff] %v569
                %v571 = vld [vmem:[%s559 + $0x28] sm:$0xff]
                %572 = vst [vmem:[%s560 + $0x78] sm:$0xff] %v571
                %v573 = vld [vmem:[%s559 + $0x30] sm:$0xff]
                %574 = vst [vmem:[%s560 + $0x90] sm:$0xff] %v573
                %v575 = vld [vmem:[%s559 + $0x38] sm:$0xff]
                %576 = vst [vmem:[%s560 + $0xa8] sm:$0xff] %v575
                %v577 = vld [vmem:[%s559 + $0x40] sm:$0xff]
                %578 = vst [vmem:[%s560 + $0xc0] sm:$0xff] %v577
                %v579 = vld [vmem:[%s559 + $0x48] sm:$0xff]
                %580 = vst [vmem:[%s560 + $0xd8] sm:$0xff] %v579
                %v581 = vld [vmem:[%s559 + $0x50] sm:$0xff]
                %582 = vst [vmem:[%s560 + $0xf0] sm:$0xff] %v581
                %v583 = vld [vmem:[%s559 + $0x58] sm:$0xff]
                %584 = vst [vmem:[%s560 + $0x108] sm:$0xff] %v583
                %v585 = vld [vmem:[%s559 + $0x60] sm:$0xff]
                %586 = vst [vmem:[%s560 + $0x120] sm:$0xff] %v585
                %v587 = vld [vmem:[%s559 + $0x68] sm:$0xff]
                %588 = vst [vmem:[%s560 + $0x138] sm:$0xff] %v587
                %v589 = vld [vmem:[%s559 + $0x70] sm:$0xff]
                %590 = vst [vmem:[%s560 + $0x150] sm:$0xff] %v589
                %v591 = vld [vmem:[%s559 + $0x78] sm:$0xff]
                %592 = vst [vmem:[%s560 + $0x168] sm:$0xff] %v591
                %v593 = vld [vmem:[%s559 + $0x80] sm:$0xff]
                %594 = vst [vmem:[%s560 + $0x180] sm:$0xff] %v593
                %v595 = vld [vmem:[%s559 + $0x88] sm:$0xff]
                %596 = vst [vmem:[%s560 + $0x198] sm:$0xff] %v595
                %v597 = vld [vmem:[%s559 + $0x90] sm:$0xff]
                %598 = vst [vmem:[%s560 + $0x1b0] sm:$0xff] %v597
                %v599 = vld [vmem:[%s559 + $0x98] sm:$0xff]
                %600 = vst [vmem:[%s560 + $0x1c8] sm:$0xff] %v599
                %v601 = vld [vmem:[%s559 + $0xa0] sm:$0xff]
                %602 = vst [vmem:[%s560 + $0x1e0] sm:$0xff] %v601
                %v603 = vld [vmem:[%s559 + $0xa8] sm:$0xff]
                %604 = vst [vmem:[%s560 + $0x1f8] sm:$0xff] %v603
                %v605 = vld [vmem:[%s559 + $0xb0] sm:$0xff]
                %606 = vst [vmem:[%s560 + $0x210] sm:$0xff] %v605
                %v607 = vld [vmem:[%s559 + $0xb8] sm:$0xff]
                %608 = vst [vmem:[%s560 + $0x228] sm:$0xff] %v607
                %v609 = vld [vmem:[%s559 + $0xc0] sm:$0xff]
                %610 = vst [vmem:[%s560 + $0x240] sm:$0xff] %v609
                %v611 = vld [vmem:[%s559 + $0xc8] sm:$0xff]
                %612 = vst [vmem:[%s560 + $0x258] sm:$0xff] %v611
                %v613 = vld [vmem:[%s559 + $0xd0] sm:$0xff]
                %614 = vst [vmem:[%s560 + $0x270] sm:$0xff] %v613
                %v615 = vld [vmem:[%s559 + $0xd8] sm:$0xff]
                %616 = vst [vmem:[%s560 + $0x288] sm:$0xff] %v615
                %v617 = vld [vmem:[%s559 + $0xe0] sm:$0xff]
                %618 = vst [vmem:[%s560 + $0x2a0] sm:$0xff] %v617
                %v619 = vld [vmem:[%s559 + $0xe8] sm:$0xff]
                %620 = vst [vmem:[%s560 + $0x2b8] sm:$0xff] %v619
                %v621 = vld [vmem:[%s559 + $0xf0] sm:$0xff]
                %622 = vst [vmem:[%s560 + $0x2d0] sm:$0xff] %v621
                %v623 = vld [vmem:[%s559 + $0xf8] sm:$0xff]
                %624 = vst [vmem:[%s560 + $0x2e8] sm:$0xff] %v623
              $region83: #{tpu_custom_call.1} parent=77 // loop_footer
                %s558 = sadd.s32 1, %s554
              $region84: #{tpu_custom_call.1} parent=77 // loop_footer_branch
                %553 = sbr.rel target = $region80
              $region85: #{tpu_custom_call.1} parent=77 // loop_exit
                _
            $region78: #{tpu_custom_call.1} parent=69 // pred_fallthru
              _
          $region70: #{tpu_custom_call.1} parent=65 // pred_fallthru
            _
          %701 = vnop
        $region66: #{tpu_custom_call.1} parent=57 // pred_fallthru
          _
      $region58: #{tpu_custom_call.1} parent=5 // pred_fallthru
        _
      %p702 = scmp.le.s32.totalorder 2, %s7
      // Predicated region
      $region101: #{tpu_custom_call.1} parent=5 // pred_check
        %p703 = pneg %p702
      $region102: #{tpu_custom_call.1} parent=5 // pred_check_branch
        %705 = sbr.rel (%p703) target = $region104
      $region103: #{tpu_custom_call.1} parent=5 // pred_region
        %s706 = ssub.s32 %s7, 2
        // Predicated region
        $region105: #{tpu_custom_call.1} parent=103 // pred_check
          %p707 = pneg %p62
        $region106: #{tpu_custom_call.1} parent=103 // pred_check_branch
          %709 = sbr.rel (%p707) target = $region108
        $region107: #{tpu_custom_call.1} parent=103 // pred_region
          %s710 = sand.u32 %s47, 1
          %s711 = sand.u32 %s47, 1
          %s712 = smul.addr %s711, 256
          %s713 = scalar_lea.vmem [#allocation3], %s712
        $region108: #{tpu_custom_call.1} parent=103 // pred_fallthru
          _
      $region104: #{tpu_custom_call.1} parent=5 // pred_fallthru
        _
    $region6: #{tpu_custom_call.1} parent=1 // loop_footer
      %s11 = sadd.s32 1, %s7
    $region7: #{tpu_custom_call.1} parent=1 // loop_footer_branch
      %6 = sbr.rel target = $region3
    $region8: #{tpu_custom_call.1} parent=1 // loop_exit
      _

</llo_original>
